<compile_context>
chip_gen: v6e
topology: v6e:2x2x1
jax: 0.10.0
libtpu: 0.0.40
codegen_flags: <defaults>
</compile_context>

<pallas_src>
import numpy as np
import jax
import jax.numpy as jnp
from jax import lax
from jax.experimental import pallas as pl
from jax.experimental.pallas import tpu as pltpu


def shuffle_self_attention(feature_map, wq, wk, wv, *, n_head, n_channel, n_vchannel):
    """Returns (output [B, n_head*n_vchannel, n_depth, d_features],
                attn   [n_head*B, n_depth, n_depth])."""
    B, n_depth, d_f = feature_map.shape
    dq = n_channel * d_f          # per-head query/key width
    dv = n_vchannel * d_f         # per-head value width
    Dtot = 2 * dq + dv
    inv_temp = float(1.0 / np.power(n_depth, 0.5))

    # ---- trace-time weight plumbing (tiny, done once by XLA) ----------------
    # Per-head column slices of wq/wk/wv, concatenated into one Q|K|V weight so
    # the in-kernel projection is a single MXU matmul. 1/temperature is folded
    # into the Q columns; weights are cast to bf16 for the MXU.
    wq_h = wq.reshape(d_f, n_head, dq).transpose(1, 0, 2) * inv_temp
    wk_h = wk.reshape(d_f, n_head, dq).transpose(1, 0, 2)
    wv_h = wv.reshape(d_f, n_head, dv).transpose(1, 0, 2)
    w_heads = jnp.concatenate([wq_h, wk_h, wv_h], axis=-1).astype(jnp.bfloat16)

    # ---- batch-group size: biggest divisor of B within a small VMEM budget --
    # (blocks are double-buffered; budget sized conservatively for v7x 64 MiB).
    per_b_bytes = 4 * n_depth * (d_f + dv + n_depth) + 4 * n_depth * Dtot
    budget = 4 * 1024 * 1024
    Gb = 1
    for g in range(B, 0, -1):
        if B % g == 0 and g * per_b_bytes <= budget:
            Gb = g
            break

    def kernel(x_ref, w_ref, out_ref, attn_ref):
        x = x_ref[...].astype(jnp.bfloat16)           # (Gb, n_depth, d_f)
        w = w_ref[0]                                  # (d_f, 2*dq+dv), bf16
        # One MXU matmul for this head's Q|K|V (Q columns pre-scaled by 1/T).
        qkv = lax.dot_general(x, w, (((2,), (0,)), ((), ())),
                              preferred_element_type=jnp.float32)   # (Gb, n_depth, Dtot)
        q = qkv[..., :dq]
        k = qkv[..., dq:2 * dq]
        v = qkv[..., 2 * dq:]
        # Scores: contract the feature dim of both operands -> K fed transposed,
        # no explicit .T / XLU transpose.
        s = lax.dot_general(q.astype(jnp.bfloat16), k.astype(jnp.bfloat16),
                            (((2,), (2,)), ((0,), (0,))),
                            preferred_element_type=jnp.float32)     # (Gb, n_depth, n_depth)
        # Stable softmax over dim=2, kept in f32 (v5e has no bf16 VPU/EUP).
        s = s - jnp.max(s, axis=-1, keepdims=True)
        e = jnp.exp(s)
        p = e * pl.reciprocal(jnp.sum(e, axis=-1, keepdims=True), approx=True)
        # TODO(synk): nn.Dropout(p=0.1) in ScaledDotProduction is identity at
        # inference time; not applied here.
        o = lax.dot_general(p.astype(jnp.bfloat16), v.astype(jnp.bfloat16),
                            (((2,), (1,)), ((0,), (0,))),
                            preferred_element_type=jnp.float32)     # (Gb, n_depth, dv)
        attn_ref[0] = p
        out_ref[0] = o

    out, attn = pl.pallas_call(
        kernel,
        out_shape=(jax.ShapeDtypeStruct((n_head, B, n_depth, dv), jnp.float32),
                   jax.ShapeDtypeStruct((n_head, B, n_depth, n_depth), jnp.float32)),
        grid=(B // Gb, n_head),
        in_specs=[pl.BlockSpec((Gb, n_depth, d_f), lambda b, h: (b, 0, 0)),
                  pl.BlockSpec((1, d_f, Dtot), lambda b, h: (h, 0, 0))],
        out_specs=(pl.BlockSpec((1, Gb, n_depth, dv), lambda b, h: (h, b, 0, 0)),
                   pl.BlockSpec((1, Gb, n_depth, n_depth), lambda b, h: (h, b, 0, 0))),
        compiler_params=pltpu.CompilerParams(
            dimension_semantics=("parallel", "parallel")),
    )(feature_map, w_heads)

    # ---- un-shuffle output to [B, n_head*n_vchannel, n_depth, d_features] ---
    # (pure layout plumbing; stays in JAX)
    o = jnp.transpose(out, (1, 2, 0, 3))              # (B, n_depth, n_head, dv)
    o = o.reshape(B, n_depth, n_head * n_vchannel, d_f)
    o = jnp.transpose(o, (0, 2, 1, 3))                # (B, H*Vc, n_depth, d_f)
    attn = attn.reshape(n_head * B, n_depth, n_depth)
    return o, attn


def _reference(feature_map, wq, wk, wv, *, n_head, n_channel, n_vchannel):
    """Pure-JAX f32 reference of the same forward pass (for correctness check)."""
    B, n_depth, d_f = feature_map.shape
    q = jnp.einsum('btd,de->bte', feature_map, wq)
    k = jnp.einsum('btd,de->bte', feature_map, wk)
    v = jnp.einsum('btd,de->bte', feature_map, wv)

    def to_heads(t, nc):
        t = t.reshape(B, n_depth, n_head, nc * d_f)
        return jnp.transpose(t, (2, 0, 1, 3)).reshape(n_head * B, n_depth, nc * d_f)

    qh, kh, vh = to_heads(q, n_channel), to_heads(k, n_channel), to_heads(v, n_vchannel)
    s = jnp.einsum('bqd,bkd->bqk', qh, kh) / np.power(n_depth, 0.5)
    p = jax.nn.softmax(s, axis=-1)
    o = jnp.einsum('bqk,bkd->bqd', p, vh)
    o = o.reshape(n_head, B, n_depth, n_vchannel * d_f)
    o = jnp.transpose(o, (1, 2, 0, 3)).reshape(B, n_depth, n_head * n_vchannel, d_f)
    o = jnp.transpose(o, (0, 2, 1, 3))
    return o, p


if __name__ == "__main__":
    # Small, deterministic configuration.
    batch = 2
    n_depth = 8
    d_features = 32
    n_head = 2
    n_channel = 2
    n_vchannel = 2

    key = jax.random.PRNGKey(0)
    kx, kq, kk, kv = jax.random.split(key, 4)

    feature_map = jax.random.normal(kx, (batch, n_depth, d_features), dtype=jnp.float32)

    # Xavier-normal init for the expansion weights (fan_in = d_features,
    # fan_out = n_head*n_{v}channel*d_features), matching nn.init.xavier_normal_.
    Dq = n_head * n_channel * d_features
    Dv = n_head * n_vchannel * d_features
    std_q = float(np.sqrt(2.0 / (d_features + Dq)))
    std_v = float(np.sqrt(2.0 / (d_features + Dv)))
    wq = std_q * jax.random.normal(kq, (d_features, Dq), dtype=jnp.float32)
    wk = std_q * jax.random.normal(kk, (d_features, Dq), dtype=jnp.float32)
    wv = std_v * jax.random.normal(kv, (d_features, Dv), dtype=jnp.float32)

    output, attn = shuffle_self_attention(
        feature_map, wq, wk, wv,
        n_head=n_head, n_channel=n_channel, n_vchannel=n_vchannel)
    jax.block_until_ready((output, attn))

    assert output.shape == (batch, n_head * n_vchannel, n_depth, d_features)
    assert attn.shape == (n_head * batch, n_depth, n_depth)
    # softmax rows must sum to ~1 (approx reciprocal + bf16 matmuls -> loose tol)
    assert bool(jnp.allclose(jnp.sum(attn, axis=-1), 1.0, atol=1e-2))

    # Compare against a pure-JAX f32 reference (bf16 MXU inputs -> loose tol).
    ref_out, ref_attn = _reference(
        feature_map, wq, wk, wv,
        n_head=n_head, n_channel=n_channel, n_vchannel=n_vchannel)
    assert bool(jnp.allclose(attn, ref_attn, rtol=5e-2, atol=5e-2))
    assert bool(jnp.allclose(output, ref_out, rtol=5e-2, atol=5e-2))

    print("KERNEL_OK")
</pallas_src>

<mosaic_0001>
module attributes {stable_mosaic.version = 11 : i64} {
  func.func @kernel(%arg0: i32, %arg1: i32, %arg2: memref<2x8x32xf32, #tpu.memory_space<vmem>>, %arg3: memref<1x32x192xbf16, #tpu.memory_space<vmem>>, %arg4: memref<1x2x8x64xf32, #tpu.memory_space<vmem>>, %arg5: memref<1x2x8x8xf32, #tpu.memory_space<vmem>>) attributes {dimension_semantics = [#tpu.dimension_semantics<parallel>, #tpu.dimension_semantics<parallel>], iteration_bounds = array<i64: 1, 2>, scalar_prefetch = 0 : i64, scratch_operands = 0 : i64, tpu.core_type = #tpu.core_type<tc>, window_params = [{transform_indices = @transform_0, window_bounds = array<i64: 2, 8, 32>}, {transform_indices = @transform_1, window_bounds = array<i64: 1, 32, 192>}, {transform_indices = @transform_2, window_bounds = array<i64: 1, 2, 8, 64>}, {transform_indices = @transform_3, window_bounds = array<i64: 1, 2, 8, 8>}]} {
    %c0 = arith.constant 0 : index
    %c0_0 = arith.constant 0 : index
    %c0_1 = arith.constant 0 : index
    %0 = vector.load %arg2[%c0, %c0_0, %c0_1] : memref<2x8x32xf32, #tpu.memory_space<vmem>>, vector<2x8x32xf32>
    %1 = arith.truncf %0 : vector<2x8x32xf32> to vector<2x8x32xbf16>
    %c0_2 = arith.constant 0 : index
    %c0_3 = arith.constant 0 : index
    %c0_4 = arith.constant 0 : index
    %2 = vector.load %arg3[%c0_2, %c0_3, %c0_4] : memref<1x32x192xbf16, #tpu.memory_space<vmem>>, vector<1x32x192xbf16>
    %3 = vector.shape_cast %2 : vector<1x32x192xbf16> to vector<32x192xbf16>
    %cst = arith.constant dense<0.000000e+00> : vector<2x8x192xf32>
    %4 = tpu.matmul %1, %3, %cst {dimension_numbers = #tpu.dot_dimension_numbers<[2], [0], [0, 1], [1], [0, 0, 0, 1, 1, 1], [], []>} : vector<2x8x32xbf16>, vector<32x192xbf16>, vector<2x8x192xf32> -> vector<2x8x192xf32>
    %5 = vector.extract_strided_slice %4 {offsets = [0, 0, 0], sizes = [2, 8, 64], strides = [1, 1, 1]} : vector<2x8x192xf32> to vector<2x8x64xf32>
    %6 = vector.extract_strided_slice %4 {offsets = [0, 0, 64], sizes = [2, 8, 64], strides = [1, 1, 1]} : vector<2x8x192xf32> to vector<2x8x64xf32>
    %7 = vector.extract_strided_slice %4 {offsets = [0, 0, 128], sizes = [2, 8, 64], strides = [1, 1, 1]} : vector<2x8x192xf32> to vector<2x8x64xf32>
    %8 = arith.truncf %5 : vector<2x8x64xf32> to vector<2x8x64xbf16>
    %9 = arith.truncf %6 : vector<2x8x64xf32> to vector<2x8x64xbf16>
    %cst_5 = arith.constant dense<0.000000e+00> : vector<2x8x8xf32>
    %10 = tpu.matmul %8, %9, %cst_5 {dimension_numbers = #tpu.dot_dimension_numbers<[2], [2], [1], [1], [0, 0, 0, 1, 1, 1], [0], [0]>} : vector<2x8x64xbf16>, vector<2x8x64xbf16>, vector<2x8x8xf32> -> vector<2x8x8xf32>
    %cst_6 = arith.constant dense<0xFF800000> : vector<2x8xf32>
    %11 = vector.multi_reduction <maximumf>, %10, %cst_6 [2] : vector<2x8x8xf32> to vector<2x8xf32>
    %12 = vector.shape_cast %11 : vector<2x8xf32> to vector<2x8x1xf32>
    %13 = vector.broadcast %12 : vector<2x8x1xf32> to vector<2x8x8xf32>
    %14 = arith.subf %10, %13 : vector<2x8x8xf32>
    %15 = math.exp %14 : vector<2x8x8xf32>
    %cst_7 = arith.constant dense<0.000000e+00> : vector<2x8xf32>
    %16 = vector.multi_reduction <add>, %15, %cst_7 [2] : vector<2x8x8xf32> to vector<2x8xf32>
    %17 = vector.shape_cast %16 : vector<2x8xf32> to vector<2x8x1xf32>
    %18 = tpu.reciprocal %17 {approx = true} : vector<2x8x1xf32> -> vector<2x8x1xf32>
    %19 = vector.broadcast %18 : vector<2x8x1xf32> to vector<2x8x8xf32>
    %20 = arith.mulf %15, %19 : vector<2x8x8xf32>
    %21 = arith.truncf %20 : vector<2x8x8xf32> to vector<2x8x8xbf16>
    %22 = arith.truncf %7 : vector<2x8x64xf32> to vector<2x8x64xbf16>
    %cst_8 = arith.constant dense<0.000000e+00> : vector<2x8x64xf32>
    %23 = tpu.matmul %21, %22, %cst_8 {dimension_numbers = #tpu.dot_dimension_numbers<[2], [1], [1], [2], [0, 0, 0, 1, 1, 2], [0], [0]>} : vector<2x8x8xbf16>, vector<2x8x64xbf16>, vector<2x8x64xf32> -> vector<2x8x64xf32>
    %c0_9 = arith.constant 0 : index
    %c0_10 = arith.constant 0 : index
    %c0_11 = arith.constant 0 : index
    %c0_12 = arith.constant 0 : index
    %24 = vector.load %arg5[%c0_9, %c0_10, %c0_11, %c0_12] : memref<1x2x8x8xf32, #tpu.memory_space<vmem>>, vector<1x2x8x8xf32>
    %25 = vector.shape_cast %24 : vector<1x2x8x8xf32> to vector<2x8x8xf32>
    %26 = vector.shape_cast %20 : vector<2x8x8xf32> to vector<1x2x8x8xf32>
    tpu.vector_store %arg5[%c0_9, %c0_10, %c0_11, %c0_12], %26 {strides = array<i32>} : memref<1x2x8x8xf32, #tpu.memory_space<vmem>>, vector<1x2x8x8xf32>,
    %c0_13 = arith.constant 0 : index
    %c0_14 = arith.constant 0 : index
    %c0_15 = arith.constant 0 : index
    %c0_16 = arith.constant 0 : index
    %27 = vector.load %arg4[%c0_13, %c0_14, %c0_15, %c0_16] : memref<1x2x8x64xf32, #tpu.memory_space<vmem>>, vector<1x2x8x64xf32>
    %28 = vector.shape_cast %27 : vector<1x2x8x64xf32> to vector<2x8x64xf32>
    %29 = vector.shape_cast %23 : vector<2x8x64xf32> to vector<1x2x8x64xf32>
    tpu.vector_store %arg4[%c0_13, %c0_14, %c0_15, %c0_16], %29 {strides = array<i32>} : memref<1x2x8x64xf32, #tpu.memory_space<vmem>>, vector<1x2x8x64xf32>,
    return
  }
  func.func @transform_0(%arg0: i32, %arg1: i32) -> (i32, i32, i32) {
    %c0_i32 = arith.constant 0 : i32
    %c0_i32_0 = arith.constant 0 : i32
    %c0_i32_1 = arith.constant 0 : i32
    return %arg0, %c0_i32, %c0_i32_0 : i32, i32, i32
  }
  func.func @transform_1(%arg0: i32, %arg1: i32) -> (i32, i32, i32) {
    %c0_i32 = arith.constant 0 : i32
    %c0_i32_0 = arith.constant 0 : i32
    %c0_i32_1 = arith.constant 0 : i32
    return %arg1, %c0_i32, %c0_i32_0 : i32, i32, i32
  }
  func.func @transform_2(%arg0: i32, %arg1: i32) -> (i32, i32, i32, i32) {
    %c0_i32 = arith.constant 0 : i32
    %c0_i32_0 = arith.constant 0 : i32
    %c0_i32_1 = arith.constant 0 : i32
    return %arg1, %arg0, %c0_i32, %c0_i32_0 : i32, i32, i32, i32
  }
  func.func @transform_3(%arg0: i32, %arg1: i32) -> (i32, i32, i32, i32) {
    %c0_i32 = arith.constant 0 : i32
    %c0_i32_0 = arith.constant 0 : i32
    %c0_i32_1 = arith.constant 0 : i32
    return %arg1, %arg0, %c0_i32, %c0_i32_0 : i32, i32, i32, i32
  }
}

</mosaic_0001>

<llo_original>
// kernel: tpu_custom_call.1
$region0: #{tpu_custom_call.1}
  #allocation0 [shape = 'u32[]', space=smem, size = 0x4, offset = 0x4, fixed_abs, tag = 'smem constant byte address 0x4 - core index']
  #allocation1 [shape = 'u32[144,128]{1,0:T(1,128)}', space=vmem, size = 0x12000, scoped, tag = 'internal scratch']
  %s0 = inlined_call_operand.hbm [shape: f32[2,8,32], index: 0, kind: input, shape index: {}]
  %s1 = inlined_call_operand.hbm [shape: bf16[2,32,192], index: 1, kind: input, shape index: {}]
  %s2 = inlined_call_operand.hbm [shape: f32[2,2,8,64], index: 2, kind: output, shape index: {0}]
  %s3 = inlined_call_operand.hbm [shape: f32[2,2,8,8], index: 3, kind: output, shape index: {1}]
  %4 = xla_tuple %s2, %s3
  %s5 = sld [smem:[#allocation0]]
  $region57: #{tpu_custom_call.1} parent=0
    _
  %s7 = ssub.s32 1, %s5
  %s8 = scalar_select 0, %s7, %s5
  $region1: #{tpu_custom_call.1} parent=0
    #allocation2 [shape = 'u8[8192]{0}', space=vmem, size = 0x2000, scoped, tag = 'input window, operand 0, single buffered']
    #allocation3 [shape = 's32[2]{0}', space=sflag, size = 0x8, scoped, tag = 'scoped memory for tpu_custom_call.1']
    #allocation4 [shape = 's32[2]{0}', space=sflag, size = 0x8, scoped, tag = 'scoped memory for tpu_custom_call.1']
    #allocation5 [shape = 'u8[32768]{0}', space=vmem, size = 0x8000, scoped, tag = 'input window, operand 1']
    #allocation6 [shape = 's32[2]{0}', space=sflag, size = 0x8, scoped, tag = 'scoped memory for tpu_custom_call.1']
    #allocation7 [shape = 'u8[16384]{0}', space=vmem, size = 0x4000, scoped, tag = 'output window, operand 0']
    #allocation8 [shape = 'u8[16384]{0}', space=vmem, size = 0x4000, scoped, tag = 'output window, operand 1']
    #allocation9 [shape = 's32[2]{0}', space=sflag, size = 0x8, scoped, tag = 'scoped memory for tpu_custom_call.1']
    %9 = vsyncpa [#allocation3], 0
    %10 = vsyncpa [#allocation6], 0
    %s11 = scalar_lea.sflag [#allocation6], 1
    %12 = vsyncpa %s11, 0
    %13 = vsyncpa [#allocation4], 0
    %s14 = scalar_lea.sflag [#allocation4], 1
    %15 = vsyncpa %s14, 0
    %16 = vsyncpa [#allocation9], 0
    %s17 = scalar_lea.sflag [#allocation9], 1
    %18 = vsyncpa %s17, 0
    loop: start=0, step=1, limit=4
    $region2: #{tpu_custom_call.1} parent=1 // loop_pre_header
      _
    $region3: #{tpu_custom_call.1} parent=1 // loop_header
      %s20 = sphi 0, %s24
      %p21 = scmp.ge.s32.totalorder %s20, 4
      %s27 = sphi 0, %s39
      %s28 = sphi 0, %s35
      %s29 = sphi 0, %s27
      %s30 = sphi 0, %s28
      %s31 = sphi 0, %s29
      %s32 = sphi 0, %s30
      %s42 = sphi 0, %s44
      %s45 = sphi 0, %s42
      %s46 = sphi 0, %s45
      %s62 = sphi 0, %s46
      %s68 = sphi 0, %s70
      %s71 = sphi 0, %s68
      %s72 = sphi 0, %s71
      %s88 = sphi 0, %s72
      %s96 = sphi 0, %s98
      %s99 = sphi 0, %s96
      %s100 = sphi 0, %s99
      %s116 = sphi 0, %s100
      %s124 = sphi 0, %s126
      %s127 = sphi 0, %s124
      %s128 = sphi 0, %s127
      %s144 = sphi 0, %s128
    $region4: #{tpu_custom_call.1} parent=1 // loop_header_branch
      %23 = sbr.rel (%p21) target = $region8
    $region5: #{tpu_custom_call.1} parent=1 // loop_body
      %s25 = ssub.s32 %s20, 1
      %s26 = ssub.s32 %s20, 2
      %s33 = sadd.s32 1, %s28
      %p34 = scmp.ge.s32.totalorder %s33, 2
      %s35 = scalar_select %p34, 0, %s33
      %s36 = sadd.s32 1, %s27
      %s37 = scalar_select %p34, %s36, %s27
      %p38 = scmp.ge.s32.totalorder %s37, 1
      %s39 = scalar_select %p38, 0, %s37
      %s40 = ssub.s32 %s27, %s39
      %p41 = scmp.eq.s32.totalorder %s40, 0
      %s43 = sadd.s32 %s42, 1
      %s44 = scalar_select %p41, %s42, %s43
      %p47 = pneg %p41
      %p48 = scmp.eq.s32.totalorder %s20, 1
      %p49 = por %p47, %p48
      %p50 = scmp.ne.s32.totalorder %s42, %s45
      %p51 = scmp.eq.s32.totalorder %s20, 0
      %p52 = por %p50, %p51
      %p53 = scmp.ne.s32.totalorder %s42, %s45
      %p54 = scmp.eq.s32.totalorder %s25, 1
      %p55 = por %p53, %p54
      %p56 = scmp.ne.s32.totalorder %s45, %s46
      %p57 = scmp.eq.s32.totalorder %s25, 0
      %p58 = por %p56, %p57
      %p59 = scmp.ne.s32.totalorder %s45, %s46
      %p60 = scmp.eq.s32.totalorder %s26, 1
      %p61 = por %p59, %p60
      %p63 = scmp.ne.s32.totalorder %s46, %s62
      %p64 = scmp.eq.s32.totalorder %s26, 0
      %p65 = por %p63, %p64
      %s66 = ssub.s32 %s28, %s35
      %p67 = scmp.eq.s32.totalorder %s66, 0
      %s69 = sadd.s32 %s68, 1
      %s70 = scalar_select %p67, %s68, %s69
      %p73 = pneg %p67
      %p74 = scmp.eq.s32.totalorder %s20, 1
      %p75 = por %p73, %p74
      %p76 = scmp.ne.s32.totalorder %s68, %s71
      %p77 = scmp.eq.s32.totalorder %s20, 0
      %p78 = por %p76, %p77
      %p79 = scmp.ne.s32.totalorder %s68, %s71
      %p80 = scmp.eq.s32.totalorder %s25, 1
      %p81 = por %p79, %p80
      %p82 = scmp.ne.s32.totalorder %s71, %s72
      %p83 = scmp.eq.s32.totalorder %s25, 0
      %p84 = por %p82, %p83
      %p85 = scmp.ne.s32.totalorder %s71, %s72
      %p86 = scmp.eq.s32.totalorder %s26, 1
      %p87 = por %p85, %p86
      %p89 = scmp.ne.s32.totalorder %s72, %s88
      %p90 = scmp.eq.s32.totalorder %s26, 0
      %p91 = por %p89, %p90
      %s92 = ssub.s32 %s28, %s35
      %s93 = ssub.s32 %s27, %s39
      %s94 = sor.u32 %s92, %s93
      %p95 = scmp.eq.s32.totalorder %s94, 0
      %s97 = sadd.s32 %s96, 1
      %s98 = scalar_select %p95, %s96, %s97
      %p101 = pneg %p95
      %p102 = scmp.eq.s32.totalorder %s20, 1
      %p103 = por %p101, %p102
      %p104 = scmp.ne.s32.totalorder %s96, %s99
      %p105 = scmp.eq.s32.totalorder %s20, 0
      %p106 = por %p104, %p105
      %p107 = scmp.ne.s32.totalorder %s96, %s99
      %p108 = scmp.eq.s32.totalorder %s25, 1
      %p109 = por %p107, %p108
      %p110 = scmp.ne.s32.totalorder %s99, %s100
      %p111 = scmp.eq.s32.totalorder %s25, 0
      %p112 = por %p110, %p111
      %p113 = scmp.ne.s32.totalorder %s99, %s100
      %p114 = scmp.eq.s32.totalorder %s26, 1
      %p115 = por %p113, %p114
      %p117 = scmp.ne.s32.totalorder %s100, %s116
      %p118 = scmp.eq.s32.totalorder %s26, 0
      %p119 = por %p117, %p118
      %s120 = ssub.s32 %s28, %s35
      %s121 = ssub.s32 %s27, %s39
      %s122 = sor.u32 %s120, %s121
      %p123 = scmp.eq.s32.totalorder %s122, 0
      %s125 = sadd.s32 %s124, 1
      %s126 = scalar_select %p123, %s124, %s125
      %p129 = pneg %p123
      %p130 = scmp.eq.s32.totalorder %s20, 1
      %p131 = por %p129, %p130
      %p132 = scmp.ne.s32.totalorder %s124, %s127
      %p133 = scmp.eq.s32.totalorder %s20, 0
      %p134 = por %p132, %p133
      %p135 = scmp.ne.s32.totalorder %s124, %s127
      %p136 = scmp.eq.s32.totalorder %s25, 1
      %p137 = por %p135, %p136
      %p138 = scmp.ne.s32.totalorder %s127, %s128
      %p139 = scmp.eq.s32.totalorder %s25, 0
      %p140 = por %p138, %p139
      %p141 = scmp.ne.s32.totalorder %s127, %s128
      %p142 = scmp.eq.s32.totalorder %s26, 1
      %p143 = por %p141, %p142
      %p145 = scmp.ne.s32.totalorder %s128, %s144
      %p146 = scmp.eq.s32.totalorder %s26, 0
      %p147 = por %p145, %p146
      %p148 = scmp.le.s32.totalorder 1, %s20
      %p149 = scmp.lt.s32.totalorder %s20, 3
      %p150 = pnand %p148, %p149
      %p151 = pneg %p150
      // Predicated region
      $region9: #{tpu_custom_call.1} parent=5 // pred_check
        _
      $region10: #{tpu_custom_call.1} parent=5 // pred_check_branch
        %153 = sbr.rel (%p150) target = $region12
      $region11: #{tpu_custom_call.1} parent=5 // pred_region
        %s154 = ssub.s32 %s20, 1
        // Predicated region
        $region13: #{tpu_custom_call.1} parent=11 // pred_check
          %p155 = pneg %p58
        $region14: #{tpu_custom_call.1} parent=11 // pred_check_branch
          %157 = sbr.rel (%p155) target = $region16
        $region15: #{tpu_custom_call.1} parent=11 // pred_region
          %s158 = smul.u32 2, %s29
          %s160 = ssub.s32 256, 256
          %161 = vsyncadd [#allocation3], %s160
          %s162 = smul.addr %s158, 128
          %s163 = scalar_lea.hbm %s0, %s162
          %s164 = sshll.u32 [#allocation2], 4
          %s165 = int_to_ptr.vmem [resolvable:$true] %s164
          %170 = dma.hbm_to_vmem [thread:$0]  %s163, 256, %s165, [#allocation3], 128, 128, 8
        $region16: #{tpu_custom_call.1} parent=11 // pred_fallthru
          _
      $region12: #{tpu_custom_call.1} parent=5 // pred_fallthru
        _
      %p171 = scmp.lt.s32.totalorder %s20, 2
      // Predicated region
      $region17: #{tpu_custom_call.1} parent=5 // pred_check
        %p172 = pneg %p171
      $region18: #{tpu_custom_call.1} parent=5 // pred_check_branch
        %174 = sbr.rel (%p172) target = $region20
      $region19: #{tpu_custom_call.1} parent=5 // pred_region
        // Predicated region
        $region21: #{tpu_custom_call.1} parent=19 // pred_check
          %p175 = pneg %p78
        $region22: #{tpu_custom_call.1} parent=19 // pred_check_branch
          %177 = sbr.rel (%p175) target = $region24
        $region23: #{tpu_custom_call.1} parent=19 // pred_region
          %s178 = sand.u32 %s68, 1
          %s179 = scalar_lea.sflag [#allocation6], %s178
          %s180 = sand.u32 %s68, 1
          %s181 = smul.addr %s180, 32
          %s182 = scalar_lea.vmem [#allocation5], %s181
          %s184 = ssub.s32 512, 512
          %185 = vsyncadd %s179, %s184
          %s186 = smul.addr %s28, 8
          %s187 = smul.addr %s186, 64
          %s188 = scalar_lea.hbm %s1, %s187
          %s189 = sshll.u32 %s182, 4
          %s190 = int_to_ptr.vmem [resolvable:$true] %s189
          %195 = dma.hbm_to_vmem [thread:$0]  %s188, 512, %s190, %s179, 128, 128, 8
        $region24: #{tpu_custom_call.1} parent=19 // pred_fallthru
          _
      $region20: #{tpu_custom_call.1} parent=5 // pred_fallthru
        _
      %p196 = scmp.le.s32.totalorder 1, %s20
      %p197 = scmp.lt.s32.totalorder %s20, 3
      %p198 = pnand %p196, %p197
      %p199 = pneg %p198
      // Predicated region
      $region25: #{tpu_custom_call.1} parent=5 // pred_check
        _
      $region26: #{tpu_custom_call.1} parent=5 // pred_check_branch
        %201 = sbr.rel (%p198) target = $region28
      $region27: #{tpu_custom_call.1} parent=5 // pred_region
        %s202 = ssub.s32 %s20, 1
        // Predicated region
        $region29: #{tpu_custom_call.1} parent=27 // pred_check
          %p203 = pneg %p58
        $region30: #{tpu_custom_call.1} parent=27 // pred_check_branch
          %205 = sbr.rel (%p203) target = $region32
        $region31: #{tpu_custom_call.1} parent=27 // pred_region
          %206 = dma.done [#allocation3], 256
        $region32: #{tpu_custom_call.1} parent=27 // pred_fallthru
          _
        %s207 = sand.u32 %s71, 1
        %s208 = scalar_lea.sflag [#allocation6], %s207
        %s209 = sand.u32 %s71, 1
        %s210 = smul.addr %s209, 32
        %s211 = scalar_lea.vmem [#allocation5], %s210
        // Predicated region
        $region33: #{tpu_custom_call.1} parent=27 // pred_check
          %p212 = pneg %p84
        $region34: #{tpu_custom_call.1} parent=27 // pred_check_branch
          %214 = sbr.rel (%p212) target = $region36
        $region35: #{tpu_custom_call.1} parent=27 // pred_region
          %215 = dma.done %s208, 512
        $region36: #{tpu_custom_call.1} parent=27 // pred_fallthru
          _
        %p216 = pneg %p58
        %p217 = pneg %p55
        %s218 = sand.u32 %s71, 1
        %s219 = scalar_lea.sflag [#allocation6], %s218
        %s220 = sand.u32 %s71, 1
        %s221 = smul.addr %s220, 32
        %s222 = scalar_lea.vmem [#allocation5], %s221
        %p223 = pneg %p84
        %p224 = pneg %p81
        %p225 = pneg %p112
        %p226 = pneg %p109
        %s227 = sand.u32 %s99, 1
        %s228 = scalar_lea.sflag [#allocation4], %s227
        %s229 = sand.u32 %s99, 1
        %s230 = smul.addr %s229, 16
        %s231 = scalar_lea.vmem [#allocation7], %s230
        %p232 = pneg %p140
        %p233 = pneg %p137
        %s234 = sand.u32 %s127, 1
        %s235 = scalar_lea.sflag [#allocation9], %s234
        %s236 = sand.u32 %s127, 1
        %s237 = smul.addr %s236, 16
        %s238 = scalar_lea.vmem [#allocation8], %s237
        %s239 = smul.u32 2, %s29
        %s240 = smul.u32 2, %s29
        %s241 = smul.u32 2, %s29
        %v243 = vld [vmem:[#allocation2] sm:$0xff]
        %v244 = vld [vmem:[#allocation2 + $0x8] sm:$0xff]
        %v245 = vpack.c.bf16 %v243, %v243
        %v246 = vpack.c.bf16 %v244, %v244
        %v247 = vld [vmem:[%s211] sm:$0xff]
        %v248 = vld [vmem:[%s211 + $0x8] sm:$0xff]
        %v249 = vld [vmem:[%s211 + $0x10] sm:$0xff]
        %v250 = vld [vmem:[%s211 + $0x18] sm:$0xff]
        %v253 = vunpack.c.l.b16 %v245
        %v254 = vunpack.c.l.b16 %v246
        %v255 = vpack.c.b16 %v254, %v253
        %v260 = vunpack.c.l.b16 %v247
        %v261 = vunpack.c.h.b16 %v247
        %v262 = vunpack.c.l.b16 %v248
        %v263 = vunpack.c.h.b16 %v248
        %v264 = vunpack.c.l.b16 %v249
        %v265 = vunpack.c.h.b16 %v249
        %v266 = vunpack.c.l.b16 %v250
        %v267 = vunpack.c.h.b16 %v250
        %v268 = vpack.c.b16 %v262, %v260
        %v269 = vpack.c.b16 %v263, %v261
        %v270 = vpack.c.b16 %v266, %v264
        %v271 = vpack.c.b16 %v267, %v265
        %vm276 = vcmask 261120
        %v278 = vsel %vm276, %v255, 0
        %280 = vmatprep.subr.bf16.mxu0 0
        %281 = vmatpush1.bf16.msra.mxu0 0
        %282 = vmatprep.subr.bf16.mxu0 0
        %283 = vmatpush1.bf16.msra.mxu0 0
        %284 = vmatprep.subr.bf16.mxu0 0
        %285 = vmatpush1.bf16.msra.mxu0 0
        %286 = vmatprep.subr.bf16.mxu0 0
        %287 = vmatpush1.bf16.msra.mxu0 0
        %288 = vmatprep.subr.bf16.mxu0 0
        %289 = vmatpush1.bf16.msra.mxu0 0
        %290 = vmatprep.subr.bf16.mxu0 0
        %291 = vmatpush1.bf16.msra.mxu0 0
        %292 = vmatprep.subr.bf16.mxu0 %v271
        %293 = vmatpush1.bf16.msra.mxu0 %v270
        %294 = vmatprep.subr.bf16.mxu0 %v269
        %295 = vmatpush1.bf16.msra.mxu0 %v268
        %296 = vmatprep.subr.bf16.mxu0 0
        %297 = vmatpush2.bf16.msra.mxu0 0
        %298 = vmatprep.subr.bf16.mxu0 0
        %299 = vmatpush2.bf16.msra.mxu0 0
        %300 = vmatprep.subr.bf16.mxu0 0
        %301 = vmatpush2.bf16.msra.mxu0 0
        %302 = vmatprep.subr.bf16.mxu0 0
        %303 = vmatpush2.bf16.msra.mxu0 0
        %304 = vmatprep.subr.bf16.mxu0 0
        %305 = vmatpush2.bf16.msra.mxu0 0
        %306 = vmatprep.subr.bf16.mxu0 0
        %307 = vmatpush2.bf16.msra.mxu0 0
        %308 = vmatprep.subr.bf16.mxu0 0
        %309 = vmatpush2.bf16.msra.mxu0 0
        %310 = vmatprep.subr.bf16.mxu0 0
        %311 = vmatpush2.bf16.msra.mxu0 0
        %312 = vmatprep.mubr.bf16.mxu0 0
        %313 = vmatmul.mubr.bf16.gmra.mxu0 %v278
        %v314 = vpop.f32.mrf.mxu0
        %v315 = vadd.f32 0.0, %v314
        %v316 = vpop.f32.mrf.mxu0
        %v317 = vadd.f32 0.0, %v316
        %v318 = vpop.f32.mrf.mxu0
        %v319 = vadd.f32 0.0, %v318
        %v320 = vpop.f32.mrf.mxu0
        %v321 = vadd.f32 0.0, %v320
        %322 = vdwg.mxu0
        %v323 = vpack.c.bf16 %v315, %v315
        %v324 = vpack.c.bf16 %v319, %v319
        %326 = vrot.lane.b32.xlu0 %v323, 64
        %v327 = vpop.permute.xlu0 %326
        %vm328 = vcmask 523264
        %v330 = vsel %vm328, %v323, 0
        %v333 = vsel %vm328, %v327, 0
        %335 = vmatprep.subr.bf16.mxu0 0
        %336 = vmatpush1.bf16.xpose.msra.mxu0 0
        %337 = vmatprep.subr.bf16.mxu0 0
        %338 = vmatpush1.bf16.xpose.msra.mxu0 0
        %339 = vmatprep.subr.bf16.mxu0 0
        %340 = vmatpush1.bf16.xpose.msra.mxu0 0
        %341 = vmatprep.subr.bf16.mxu0 0
        %342 = vmatpush1.bf16.xpose.msra.mxu0 0
        %343 = vmatprep.subr.bf16.mxu0 0
        %344 = vmatpush1.bf16.xpose.msra.mxu0 0
        %345 = vmatprep.subr.bf16.mxu0 0
        %346 = vmatpush1.bf16.xpose.msra.mxu0 0
        %347 = vmatprep.subr.bf16.mxu0 0
        %348 = vmatpush1.bf16.xpose.msra.mxu0 0
        %349 = vmatprep.subr.bf16.mxu0 0
        %350 = vmatpush1.bf16.xpose.msra.mxu0 %v333
        %351 = vmatprep.subr.bf16.mxu0 0
        %352 = vmatpush2.bf16.xpose.msra.mxu0 0
        %353 = vmatprep.subr.bf16.mxu0 0
        %354 = vmatpush2.bf16.xpose.msra.mxu0 0
        %355 = vmatprep.subr.bf16.mxu0 0
        %356 = vmatpush2.bf16.xpose.msra.mxu0 0
        %357 = vmatprep.subr.bf16.mxu0 0
        %358 = vmatpush2.bf16.xpose.msra.mxu0 0
        %359 = vmatprep.subr.bf16.mxu0 0
        %360 = vmatpush2.bf16.xpose.msra.mxu0 0
        %361 = vmatprep.subr.bf16.mxu0 0
        %362 = vmatpush2.bf16.xpose.msra.mxu0 0
        %363 = vmatprep.subr.bf16.mxu0 0
        %364 = vmatpush2.bf16.xpose.msra.mxu0 0
        %365 = vmatprep.subr.bf16.mxu0 0
        %366 = vmatpush2.bf16.xpose.msra.mxu0 0
        %367 = vmatprep.mubr.bf16.mxu0 0
        %368 = vmatmul.mubr.bf16.gmra.mxu0 %v330
        %v369 = vpop.f32.mrf.mxu0
        %v370 = vadd.f32 0.0, %v369
        %v371 = vpop.f32.mrf.mxu0
        %v372 = vpop.f32.mrf.mxu0
        %v373 = vpop.f32.mrf.mxu0
        %374 = vdwg.mxu0
        %376 = vrot.lane.b32.xlu0 %v324, 64
        %v377 = vpop.permute.xlu0 %376
        %v379 = vsel %vm328, %v324, 0
        %v382 = vsel %vm328, %v377, 0
        %384 = vmatprep.subr.bf16.mxu0 0
        %385 = vmatpush1.bf16.xpose.msra.mxu0 0
        %386 = vmatprep.subr.bf16.mxu0 0
        %387 = vmatpush1.bf16.xpose.msra.mxu0 0
        %388 = vmatprep.subr.bf16.mxu0 0
        %389 = vmatpush1.bf16.xpose.msra.mxu0 0
        %390 = vmatprep.subr.bf16.mxu0 0
        %391 = vmatpush1.bf16.xpose.msra.mxu0 0
        %392 = vmatprep.subr.bf16.mxu0 0
        %393 = vmatpush1.bf16.xpose.msra.mxu0 0
        %394 = vmatprep.subr.bf16.mxu0 0
        %395 = vmatpush1.bf16.xpose.msra.mxu0 0
        %396 = vmatprep.subr.bf16.mxu0 0
        %397 = vmatpush1.bf16.xpose.msra.mxu0 0
        %398 = vmatprep.subr.bf16.mxu0 0
        %399 = vmatpush1.bf16.xpose.msra.mxu0 %v382
        %400 = vmatprep.subr.bf16.mxu0 0
        %401 = vmatpush2.bf16.xpose.msra.mxu0 0
        %402 = vmatprep.subr.bf16.mxu0 0
        %403 = vmatpush2.bf16.xpose.msra.mxu0 0
        %404 = vmatprep.subr.bf16.mxu0 0
        %405 = vmatpush2.bf16.xpose.msra.mxu0 0
        %406 = vmatprep.subr.bf16.mxu0 0
        %407 = vmatpush2.bf16.xpose.msra.mxu0 0
        %408 = vmatprep.subr.bf16.mxu0 0
        %409 = vmatpush2.bf16.xpose.msra.mxu0 0
        %410 = vmatprep.subr.bf16.mxu0 0
        %411 = vmatpush2.bf16.xpose.msra.mxu0 0
        %412 = vmatprep.subr.bf16.mxu0 0
        %413 = vmatpush2.bf16.xpose.msra.mxu0 0
        %414 = vmatprep.subr.bf16.mxu0 0
        %415 = vmatpush2.bf16.xpose.msra.mxu0 0
        %416 = vmatprep.mubr.bf16.mxu0 0
        %417 = vmatmul.mubr.bf16.gmra.mxu0 %v379
        %v418 = vpop.f32.mrf.mxu0
        %v419 = vadd.f32 0.0, %v418
        %v420 = vpop.f32.mrf.mxu0
        %v421 = vpop.f32.mrf.mxu0
        %v422 = vpop.f32.mrf.mxu0
        %423 = vdwg.mxu0
        %vm424 = vcmask 64512
        %v425 = vsel %vm424, %v370, -inf
        %426 = vmax.xlane.f32.xlu0 %v425
        %v427 = vpop.xlane.xlu0 %426
        %v428 = vsel %vm424, %v419, -inf
        %429 = vmax.xlane.f32.xlu0 %v428
        %v430 = vpop.xlane.xlu0 %429
        %v431 = vsub.f32 %v370, %v427
        %v432 = vsub.f32 %v419, %v430
        %v433 = vmul.f32 %v431, 1.442695
        %v434 = vpow.pop %v433
        %v435 = vmul.f32 %v432, 1.442695
        %v436 = vpow.pop %v435
        %v437 = vsel %vm424, %v434, 0.0
        %438 = vadd.xlane.f32.xlu0 %v437
        %v439 = vpop.xlane.xlu0 %438
        %v440 = vsel %vm424, %v436, 0.0
        %441 = vadd.xlane.f32.xlu0 %v440
        %v442 = vpop.xlane.xlu0 %441
        %v443 = vrcp.pop %v439
        %v444 = vrcp.pop %v442
        %v445 = vmul.f32 %v434, %v443
        %v446 = vmul.f32 %v436, %v444
        %v447 = vpack.c.bf16 %v445, %v445
        %v448 = vpack.c.bf16 %v446, %v446
        %v449 = vpack.c.bf16 %v317, %v317
        %v450 = vpack.c.bf16 %v321, %v321
        %v452 = vsel %vm424, %v447, 0
        %vm454 = vcmask 1043456
        %v456 = vsel %vm454, %v449, 0
        %458 = vmatprep.subr.bf16.mxu0 0
        %459 = vmatpush1.bf16.msra.mxu0 0
        %460 = vmatprep.subr.bf16.mxu0 0
        %461 = vmatpush1.bf16.msra.mxu0 0
        %462 = vmatprep.subr.bf16.mxu0 0
        %463 = vmatpush1.bf16.msra.mxu0 0
        %464 = vmatprep.subr.bf16.mxu0 0
        %465 = vmatpush1.bf16.msra.mxu0 0
        %466 = vmatprep.subr.bf16.mxu0 0
        %467 = vmatpush1.bf16.msra.mxu0 0
        %468 = vmatprep.subr.bf16.mxu0 0
        %469 = vmatpush1.bf16.msra.mxu0 0
        %470 = vmatprep.subr.bf16.mxu0 0
        %471 = vmatpush1.bf16.msra.mxu0 0
        %472 = vmatprep.subr.bf16.mxu0 0
        %473 = vmatpush1.bf16.msra.mxu0 %v456
        %474 = vmatprep.subr.bf16.mxu0 0
        %475 = vmatpush2.bf16.msra.mxu0 0
        %476 = vmatprep.subr.bf16.mxu0 0
        %477 = vmatpush2.bf16.msra.mxu0 0
        %478 = vmatprep.subr.bf16.mxu0 0
        %479 = vmatpush2.bf16.msra.mxu0 0
        %480 = vmatprep.subr.bf16.mxu0 0
        %481 = vmatpush2.bf16.msra.mxu0 0
        %482 = vmatprep.subr.bf16.mxu0 0
        %483 = vmatpush2.bf16.msra.mxu0 0
        %484 = vmatprep.subr.bf16.mxu0 0
        %485 = vmatpush2.bf16.msra.mxu0 0
        %486 = vmatprep.subr.bf16.mxu0 0
        %487 = vmatpush2.bf16.msra.mxu0 0
        %488 = vmatprep.subr.bf16.mxu0 0
        %489 = vmatpush2.bf16.msra.mxu0 0
        %490 = vmatprep.mubr.bf16.mxu0 0
        %491 = vmatmul.mubr.bf16.gmra.mxu0 %v452
        %v492 = vpop.f32.mrf.mxu0
        %v493 = vadd.f32 0.0, %v492
        %v494 = vpop.f32.mrf.mxu0
        %v495 = vpop.f32.mrf.mxu0
        %v496 = vpop.f32.mrf.mxu0
        %497 = vdwg.mxu0
        %v499 = vsel %vm424, %v448, 0
        %v502 = vsel %vm454, %v450, 0
        %504 = vmatprep.subr.bf16.mxu0 0
        %505 = vmatpush1.bf16.msra.mxu0 0
        %506 = vmatprep.subr.bf16.mxu0 0
        %507 = vmatpush1.bf16.msra.mxu0 0
        %508 = vmatprep.subr.bf16.mxu0 0
        %509 = vmatpush1.bf16.msra.mxu0 0
        %510 = vmatprep.subr.bf16.mxu0 0
        %511 = vmatpush1.bf16.msra.mxu0 0
        %512 = vmatprep.subr.bf16.mxu0 0
        %513 = vmatpush1.bf16.msra.mxu0 0
        %514 = vmatprep.subr.bf16.mxu0 0
        %515 = vmatpush1.bf16.msra.mxu0 0
        %516 = vmatprep.subr.bf16.mxu0 0
        %517 = vmatpush1.bf16.msra.mxu0 0
        %518 = vmatprep.subr.bf16.mxu0 0
        %519 = vmatpush1.bf16.msra.mxu0 %v502
        %520 = vmatprep.subr.bf16.mxu0 0
        %521 = vmatpush2.bf16.msra.mxu0 0
        %522 = vmatprep.subr.bf16.mxu0 0
        %523 = vmatpush2.bf16.msra.mxu0 0
        %524 = vmatprep.subr.bf16.mxu0 0
        %525 = vmatpush2.bf16.msra.mxu0 0
        %526 = vmatprep.subr.bf16.mxu0 0
        %527 = vmatpush2.bf16.msra.mxu0 0
        %528 = vmatprep.subr.bf16.mxu0 0
        %529 = vmatpush2.bf16.msra.mxu0 0
        %530 = vmatprep.subr.bf16.mxu0 0
        %531 = vmatpush2.bf16.msra.mxu0 0
        %532 = vmatprep.subr.bf16.mxu0 0
        %533 = vmatpush2.bf16.msra.mxu0 0
        %534 = vmatprep.subr.bf16.mxu0 0
        %535 = vmatpush2.bf16.msra.mxu0 0
        %536 = vmatprep.mubr.bf16.mxu0 0
        %537 = vmatmul.mubr.bf16.gmra.mxu0 %v499
        %v538 = vpop.f32.mrf.mxu0
        %v539 = vadd.f32 0.0, %v538
        %v540 = vpop.f32.mrf.mxu0
        %v541 = vpop.f32.mrf.mxu0
        %v542 = vpop.f32.mrf.mxu0
        %543 = vdwg.mxu0
        %544 = vst.msk [vmem:[%s238] sm:$0xff] %vm424, %v445
        %545 = vst.msk [vmem:[%s238 + $0x8] sm:$0xff] %vm424, %v446
        %546 = vst.msk [vmem:[%s231] sm:$0xff] %vm328, %v493
        %547 = vst.msk [vmem:[%s231 + $0x8] sm:$0xff] %vm328, %v539
        %s548 = sand.u32 %s99, 1
        %s549 = scalar_lea.sflag [#allocation4], %s548
        %s550 = sand.u32 %s99, 1
        %s551 = smul.addr %s550, 16
        %s552 = scalar_lea.vmem [#allocation7], %s551
        %s553 = sand.u32 %s127, 1
        %s554 = scalar_lea.sflag [#allocation9], %s553
        %s555 = sand.u32 %s127, 1
        %s556 = smul.addr %s555, 16
        %s557 = scalar_lea.vmem [#allocation8], %s556
        // Predicated region
        $region37: #{tpu_custom_call.1} parent=27 // pred_check
          %p558 = pneg %p109
        $region38: #{tpu_custom_call.1} parent=27 // pred_check_branch
          %560 = sbr.rel (%p558) target = $region40
        $region39: #{tpu_custom_call.1} parent=27 // pred_region
          %s561 = smul.u32 2, %s29
          %s563 = ssub.s32 256, 256
          %564 = vsyncadd %s549, %s563
          %s565 = smul.addr %s30, 2
          %s566 = sadd.s32 %s561, %s565
          %s567 = smul.addr %s566, 128
          %s568 = scalar_lea.hbm %s2, %s567
          %s569 = sshll.u32 %s552, 4
          %s570 = int_to_ptr.vmem [resolvable:$true] %s569
          %575 = dma.vmem_to_hbm [thread:$0]  %s570, 256, %s568, %s549, 128, 128, 8
        $region40: #{tpu_custom_call.1} parent=27 // pred_fallthru
          _
        // Predicated region
        $region41: #{tpu_custom_call.1} parent=27 // pred_check
          %p576 = pneg %p137
        $region42: #{tpu_custom_call.1} parent=27 // pred_check_branch
          %578 = sbr.rel (%p576) target = $region44
        $region43: #{tpu_custom_call.1} parent=27 // pred_region
          %s579 = smul.u32 2, %s29
          %s581 = ssub.s32 256, 256
          %582 = vsyncadd %s554, %s581
          %s583 = smul.addr %s30, 2
          %s584 = sadd.s32 %s579, %s583
          %s585 = smul.addr %s584, 128
          %s586 = scalar_lea.hbm %s3, %s585
          %s587 = sshll.u32 %s557, 4
          %s588 = int_to_ptr.vmem [resolvable:$true] %s587
          %593 = dma.vmem_to_hbm [thread:$0]  %s588, 256, %s586, %s554, 128, 128, 8
        $region44: #{tpu_custom_call.1} parent=27 // pred_fallthru
          _
      $region28: #{tpu_custom_call.1} parent=5 // pred_fallthru
        _
      %p594 = scmp.le.s32.totalorder 2, %s20
      // Predicated region
      $region45: #{tpu_custom_call.1} parent=5 // pred_check
        %p595 = pneg %p594
      $region46: #{tpu_custom_call.1} parent=5 // pred_check_branch
        %597 = sbr.rel (%p595) target = $region48
      $region47: #{tpu_custom_call.1} parent=5 // pred_region
        %s598 = ssub.s32 %s20, 2
        // Predicated region
        $region49: #{tpu_custom_call.1} parent=47 // pred_check
          %p599 = pneg %p115
        $region50: #{tpu_custom_call.1} parent=47 // pred_check_branch
          %601 = sbr.rel (%p599) target = $region52
        $region51: #{tpu_custom_call.1} parent=47 // pred_region
          %s602 = sand.u32 %s100, 1
          %s603 = scalar_lea.sflag [#allocation4], %s602
          %s604 = sand.u32 %s100, 1
          %s605 = smul.addr %s604, 16
          %s606 = scalar_lea.vmem [#allocation7], %s605
          %607 = dma.done %s603, 256
        $region52: #{tpu_custom_call.1} parent=47 // pred_fallthru
          _
        // Predicated region
        $region53: #{tpu_custom_call.1} parent=47 // pred_check
          %p608 = pneg %p143
        $region54: #{tpu_custom_call.1} parent=47 // pred_check_branch
          %610 = sbr.rel (%p608) target = $region56
        $region55: #{tpu_custom_call.1} parent=47 // pred_region
          %s611 = sand.u32 %s128, 1
          %s612 = scalar_lea.sflag [#allocation9], %s611
          %s613 = sand.u32 %s128, 1
          %s614 = smul.addr %s613, 16
          %s615 = scalar_lea.vmem [#allocation8], %s614
          %616 = dma.done %s612, 256
        $region56: #{tpu_custom_call.1} parent=47 // pred_fallthru
          _
      $region48: #{tpu_custom_call.1} parent=5 // pred_fallthru
        _
    $region6: #{tpu_custom_call.1} parent=1 // loop_footer
      %s24 = sadd.s32 1, %s20
    $region7: #{tpu_custom_call.1} parent=1 // loop_footer_branch
      %19 = sbr.rel target = $region3
    $region8: #{tpu_custom_call.1} parent=1 // loop_exit
      _
    %617 = vsyncpa [#allocation3], 1
    %s618 = scalar_lea.sflag [#allocation3], 1
    %619 = vsyncpa %s618, 1
    %620 = vsyncpa [#allocation6], 1
    %s621 = scalar_lea.sflag [#allocation6], 1
    %622 = vsyncpa %s621, 1
    %623 = vsyncpa [#allocation4], 1
    %s624 = scalar_lea.sflag [#allocation4], 1
    %625 = vsyncpa %s624, 1
    %626 = vsyncpa [#allocation9], 1
    %s627 = scalar_lea.sflag [#allocation9], 1
    %628 = vsyncpa %s627, 1

</llo_original>
